<compile_context>
chip_gen: v7x
topology: tpu7x:2x2x1
jax: 0.10.0
libtpu: 0.0.40
codegen_flags: <defaults>
</compile_context>

<pallas_src>
import functools
import math

import jax
import jax.numpy as jnp
import numpy as np
from jax.experimental import pallas as pl
from jax.experimental.pallas import tpu as pltpu


def _round_up(x, m):
    return ((x + m - 1) // m) * m


def _nbytes(shape, dtype):
    return int(np.prod(shape)) * jnp.dtype(dtype).itemsize


# ---------------------------------------------------------------------------
# Kernel 1: key projection (Conv k=3 -> ReLU -> Conv k=1), once per batch.
# Emits kenc2 = 2*sqrt(T)*k_enc (bf16) and k2 = T*||k_enc||^2 (+1e30 on padded
# text lanes) so the per-tile kernel does no temperature math and no masking.
# ---------------------------------------------------------------------------
def _keyproj_kernel(two_sqrt_temp, temp, t2, t2_pad,
                    k3_ref, wk1_ref, bk1_ref, wk2_ref, bk2_ref,
                    kenc2_ref, k2_ref):
    bf16 = jnp.bfloat16
    g = jnp.maximum(
        jnp.dot(k3_ref[...], wk1_ref[...], preferred_element_type=jnp.float32)
        + bk1_ref[...], 0.0)
    k_enc = jnp.dot(g.astype(bf16), wk2_ref[...],
                    preferred_element_type=jnp.float32) + bk2_ref[...]   # (T2p, A)
    kenc2_ref[...] = (two_sqrt_temp * k_enc).astype(bf16)
    k2 = temp * jnp.sum(k_enc * k_enc, axis=-1, keepdims=True)           # (T2p, 1)
    k2_row = k2.T                                                        # (1, T2p)
    if t2 < t2_pad:
        # Bake the padded-lane mask here (once per batch) instead of per tile.
        col = jax.lax.broadcasted_iota(jnp.int32, k2_row.shape, 1)
        k2_row = jnp.where(col < t2, k2_row, k2_row + 1e30)
    k2_ref[...] = k2_row


# ---------------------------------------------------------------------------
# Kernel 2: per-(batch, T1-tile) query projection + L2 logits + softmax.
# wq3/bq3 are pre-scaled by sqrt(temperature) in the wrapper, so
#   logits = qk2 - q2 - k2  ==  -temperature * ||q_enc - k_enc||^2.
# ---------------------------------------------------------------------------
def _aligner_kernel(q3_ref, kenc2_ref, k2_ref,
                    wq1_ref, bq1_ref, wq2_ref, bq2_ref, wq3_ref, bq3_ref,
                    attn_ref, logprob_ref):
    bf16 = jnp.bfloat16

    q3 = q3_ref[...]                                      # (tq, 3*C1) bf16
    h = jnp.maximum(
        jnp.dot(q3, wq1_ref[...], preferred_element_type=jnp.float32)
        + bq1_ref[...], 0.0)
    h = jnp.maximum(
        jnp.dot(h.astype(bf16), wq2_ref[...], preferred_element_type=jnp.float32)
        + bq2_ref[...], 0.0)
    q_enc = jnp.dot(h.astype(bf16), wq3_ref[...],
                    preferred_element_type=jnp.float32) + bq3_ref[...]   # sqrt(T)*q

    q2 = jnp.sum(q_enc * q_enc, axis=-1, keepdims=True)                  # (tq, 1)
    qk2 = jax.lax.dot_general(q_enc.astype(bf16), kenc2_ref[...],
                              dimension_numbers=(((1,), (1,)), ((), ())),
                              preferred_element_type=jnp.float32)        # (tq, T2p)
    logits = qk2 - q2 - k2_ref[...]

    # attn_prior is None -> attn_logprob is the pre-softmax logits.
    logprob_ref[...] = logits.astype(logprob_ref.dtype)

    # Padded text lanes already carry ~-1e30 via k2, so no extra masking here.
    m = jnp.max(logits, axis=-1, keepdims=True)
    e = jnp.exp(logits - m)
    inv = pl.reciprocal(jnp.sum(e, axis=-1, keepdims=True), approx=True)
    attn_ref[...] = (e * inv).astype(attn_ref.dtype)


def alignment_encoder_forward(queries, keys, params, temperature=0.0005,
                              *, tile_t1=1024, attn_dtype=jnp.bfloat16,
                              logprob_dtype=jnp.float32, return_padded=False):
    """queries: (B, C1, T1) mel, keys: (B, C2, T2) text (PyTorch NCW layout).

    Returns (attn, attn_logprob), each (B, 1, T1, T2).  `attn` defaults to
    bf16 and `attn_logprob` to f32 (selectable) to control HBM writeback on
    the mem-bound outputs.  With return_padded=True the lane-padded
    (B, 1, T1p, T2p) buffers are returned (padded T2 columns of attn are ~0,
    of attn_logprob are ~-1e30; padded T1 rows are garbage).
    """
    # TODO(synk): mask / attn_prior / conditioning arguments are not plumbed
    # through (only the default None path of the PyTorch forward is implemented).
    q = jnp.transpose(queries, (0, 2, 1)).astype(jnp.float32)   # (B, T1, C1)
    k = jnp.transpose(keys, (0, 2, 1)).astype(jnp.float32)      # (B, T2, C2)
    B, T1, C1 = q.shape
    _, T2, C2 = k.shape
    A = params["wq3"].shape[-1]
    bf16, f32 = jnp.bfloat16, jnp.float32

    tq = _round_up(min(int(tile_t1), _round_up(T1, 16)), 16)
    t1p = _round_up(T1, tq)
    t2p = _round_up(T2, 128)            # lane-dense output stores

    sqrt_t = math.sqrt(float(temperature))

    # --- im2col for the k=3 convs (taps [x[t-1], x[t], x[t+1]] on channels).
    # Zero padding matches Conv1d(padding=1) and is exact across T1 tiles.
    qp = jnp.pad(q, ((0, 0), (0, t1p - T1), (0, 0)))
    q_prev = jnp.pad(qp, ((0, 0), (1, 0), (0, 0)))[:, :t1p]
    q_next = jnp.pad(qp, ((0, 0), (0, 1), (0, 0)))[:, 1:]
    q3 = jnp.concatenate([q_prev, qp, q_next], axis=-1).astype(bf16)

    kp = jnp.pad(k, ((0, 0), (0, t2p - T2), (0, 0)))
    k_prev = jnp.pad(kp, ((0, 0), (1, 0), (0, 0)))[:, :t2p]
    k_next = jnp.pad(kp, ((0, 0), (0, 1), (0, 0)))[:, 1:]
    k3 = jnp.concatenate([k_prev, kp, k_next], axis=-1).astype(bf16)     # bf16 keys

    # --- weights (matmul operands bf16, biases f32).
    wq_weights = (
        params["wq1"].reshape(3 * C1, 2 * C1).astype(bf16),   # stacked taps
        params["bq1"].astype(f32),
        params["wq2"].astype(bf16), params["bq2"].astype(f32),
        (params["wq3"] * sqrt_t).astype(bf16),                # pre-scaled by sqrt(T)
        (params["bq3"] * sqrt_t).astype(f32),
    )
    wk_weights = (
        params["wk1"].reshape(3 * C2, 2 * C2).astype(bf16),
        params["bk1"].astype(f32),
        params["wk2"].astype(bf16), params["bk2"].astype(f32),
    )

    vmem_cap = 56 * 2**20   # leave headroom below v7x's 64 MiB physical VMEM

    # ------------------------- key projection call -------------------------
    def kconst_spec(a):
        nd = a.ndim
        return pl.BlockSpec(a.shape, lambda b, _nd=nd: (0,) * _nd)

    need_k = 2 * (_nbytes((t2p, 3 * C2), bf16) + _nbytes((t2p, A), bf16)
                  + _nbytes((1, t2p), f32))
    need_k += 2 * sum(_nbytes(w.shape, w.dtype) for w in wk_weights)
    need_k += 2 * _nbytes((t2p, 2 * C2), f32)          # relu intermediate
    vmem_k = int(min(vmem_cap, max(need_k + 16 * 2**20, 32 * 2**20)))

    keyproj = functools.partial(_keyproj_kernel, 2.0 * sqrt_t,
                                float(temperature), int(T2), int(t2p))
    kenc2, k2row = pl.pallas_call(
        keyproj,
        out_shape=(jax.ShapeDtypeStruct((B, t2p, A), bf16),
                   jax.ShapeDtypeStruct((B, 1, t2p), f32)),
        grid_spec=pltpu.PrefetchScalarGridSpec(
            num_scalar_prefetch=0, grid=(B,),
            in_specs=[pl.BlockSpec((pl.Squeezed(), t2p, 3 * C2),
                                   lambda b: (b, 0, 0))]
                     + [kconst_spec(w) for w in wk_weights],
            out_specs=[pl.BlockSpec((pl.Squeezed(), t2p, A), lambda b: (b, 0, 0)),
                       pl.BlockSpec((pl.Squeezed(), 1, t2p), lambda b: (b, 0, 0))]),
        compiler_params=pltpu.CompilerParams(
            dimension_semantics=("parallel",),
            vmem_limit_bytes=vmem_k),
    )(k3, *wk_weights)

    # --------------------------- main aligner call --------------------------
    def const_spec(a):
        nd = a.ndim
        return pl.BlockSpec(a.shape, lambda b, i, _nd=nd: (0,) * _nd)

    grid = (B, t1p // tq)
    in_specs = [
        pl.BlockSpec((pl.Squeezed(), tq, 3 * C1), lambda b, i: (b, i, 0)),
        pl.BlockSpec((pl.Squeezed(), t2p, A), lambda b, i: (b, 0, 0)),
        pl.BlockSpec((pl.Squeezed(), 1, t2p), lambda b, i: (b, 0, 0)),
    ] + [const_spec(w) for w in wq_weights]
    out_specs = [
        pl.BlockSpec((pl.Squeezed(), tq, t2p), lambda b, i: (b, i, 0)),
        pl.BlockSpec((pl.Squeezed(), tq, t2p), lambda b, i: (b, i, 0)),
    ]
    out_shape = (jax.ShapeDtypeStruct((B, t1p, t2p), attn_dtype),
                 jax.ShapeDtypeStruct((B, t1p, t2p), logprob_dtype))

    need = 2 * (_nbytes((tq, 3 * C1), bf16) + _nbytes((t2p, A), bf16)
                + _nbytes((1, t2p), f32)
                + _nbytes((tq, t2p), attn_dtype) + _nbytes((tq, t2p), logprob_dtype))
    need += 2 * sum(_nbytes(w.shape, w.dtype) for w in wq_weights)
    need += 3 * _nbytes((tq, t2p), f32)                # in-kernel f32 temporaries
    vmem_main = int(min(vmem_cap, max(need + 8 * 2**20, 32 * 2**20)))

    attn_p, logprob_p = pl.pallas_call(
        _aligner_kernel,
        out_shape=out_shape,
        grid_spec=pltpu.PrefetchScalarGridSpec(
            num_scalar_prefetch=0, grid=grid,
            in_specs=in_specs, out_specs=out_specs),
        compiler_params=pltpu.CompilerParams(
            # key_proj is hoisted, so every grid point is independent ->
            # both axes parallel (v7x megacore shards T1 tiles across cores).
            dimension_semantics=("parallel", "parallel"),
            vmem_limit_bytes=vmem_main),
    )(q3, kenc2, k2row, *wq_weights)

    if return_padded:
        return attn_p[:, None], logprob_p[:, None]
    attn = attn_p[:, :T1, :T2][:, None]                 # (B, 1, T1, T2)
    attn_logprob = logprob_p[:, :T1, :T2][:, None]      # (B, 1, T1, T2)
    return attn, attn_logprob


def init_params(key, n_mel, n_text, n_att):
    """Deterministic synthetic parameters (shapes follow AlignmentEncoder.__init__)."""
    ks = jax.random.split(key, 10)

    def w(kk, shape, scale=0.1):
        return (scale * jax.random.normal(kk, shape)).astype(jnp.float32)

    return {
        # query_proj
        "wq1": w(ks[0], (3, n_mel, 2 * n_mel)),    # Conv1d(n_mel, 2*n_mel, k=3)
        "bq1": w(ks[1], (1, 2 * n_mel)),
        "wq2": w(ks[2], (2 * n_mel, n_mel)),       # Conv1d(2*n_mel, n_mel, k=1)
        "bq2": w(ks[3], (1, n_mel)),
        "wq3": w(ks[4], (n_mel, n_att)),           # Conv1d(n_mel, n_att, k=1)
        "bq3": w(ks[5], (1, n_att)),
        # key_proj
        "wk1": w(ks[6], (3, n_text, 2 * n_text)),  # Conv1d(n_text, 2*n_text, k=3)
        "bk1": w(ks[7], (1, 2 * n_text)),
        "wk2": w(ks[8], (2 * n_text, n_att)),      # Conv1d(2*n_text, n_att, k=1)
        "bk2": w(ks[9], (1, n_att)),
    }


def _ref_forward(queries, keys, params, temperature):
    """Pure-JAX f32 reference of the same forward (for correctness check)."""
    q = jnp.transpose(queries, (0, 2, 1)).astype(jnp.float32)
    k = jnp.transpose(keys, (0, 2, 1)).astype(jnp.float32)

    def conv3(x, w, b):
        T = x.shape[1]
        xp = jnp.pad(x, ((0, 0), (1, 1), (0, 0)))
        return (jnp.einsum("btc,cd->btd", xp[:, 0:T], w[0]) +
                jnp.einsum("btc,cd->btd", xp[:, 1:T + 1], w[1]) +
                jnp.einsum("btc,cd->btd", xp[:, 2:T + 2], w[2]) + b)

    h = jax.nn.relu(conv3(q, params["wq1"], params["bq1"]))
    h = jax.nn.relu(h @ params["wq2"] + params["bq2"])
    q_enc = h @ params["wq3"] + params["bq3"]

    g = jax.nn.relu(conv3(k, params["wk1"], params["bk1"]))
    k_enc = g @ params["wk2"] + params["bk2"]

    dist = jnp.sum((q_enc[:, :, None, :] - k_enc[:, None, :, :]) ** 2, axis=-1)
    attn = -temperature * dist[:, None]            # (B, 1, T1, T2)
    logprob = attn
    attn = jax.nn.softmax(attn, axis=3)
    return attn, logprob


if __name__ == "__main__":
    B, n_mel, n_text, n_att = 2, 16, 32, 16
    T1, T2 = 16, 8
    temperature = 0.0005

    key = jax.random.PRNGKey(0)
    kq, kk, kp = jax.random.split(key, 3)
    queries = jax.random.normal(kq, (B, n_mel, T1), dtype=jnp.float32)  # B x C1 x T1
    keys = jax.random.normal(kk, (B, n_text, T2), dtype=jnp.float32)    # B x C2 x T2
    params = init_params(kp, n_mel, n_text, n_att)

    attn, attn_logprob = alignment_encoder_forward(queries, keys, params, temperature)
    jax.block_until_ready((attn, attn_logprob))

    ref_attn, ref_logprob = _ref_forward(queries, keys, params, temperature)
    # bf16 matmul operands + bf16 attn output + approx-reciprocal softmax ->
    # relaxed (but still meaningful) tolerances; accumulation stays f32.
    np.testing.assert_allclose(np.asarray(attn.astype(jnp.float32)),
                               np.asarray(ref_attn), atol=3e-3, rtol=3e-2)
    np.testing.assert_allclose(np.asarray(attn_logprob.astype(jnp.float32)),
                               np.asarray(ref_logprob), atol=5e-4, rtol=3e-2)
    assert attn.shape == (B, 1, T1, T2) and attn_logprob.shape == (B, 1, T1, T2)

    print("KERNEL_OK")
</pallas_src>

<mosaic_0001>
module attributes {stable_mosaic.version = 11 : i64} {
  func.func @_keyproj_kernel(%arg0: i32, %arg1: memref<1x128x96xbf16, #tpu.memory_space<vmem>>, %arg2: memref<96x64xbf16, #tpu.memory_space<vmem>>, %arg3: memref<1x64xf32, #tpu.memory_space<vmem>>, %arg4: memref<64x16xbf16, #tpu.memory_space<vmem>>, %arg5: memref<1x16xf32, #tpu.memory_space<vmem>>, %arg6: memref<1x128x16xbf16, #tpu.memory_space<vmem>>, %arg7: memref<1x1x128xf32, #tpu.memory_space<vmem>>) attributes {dimension_semantics = [#tpu.dimension_semantics<parallel>], iteration_bounds = array<i64: 2>, scalar_prefetch = 0 : i64, scratch_operands = 0 : i64, tpu.core_type = #tpu.core_type<tc>, window_params = [{transform_indices = @transform_0, window_bounds = array<i64: 1, 128, 96>}, {pipeline_mode = #tpu.pipeline_mode<synchronous>, transform_indices = @transform_1, window_bounds = array<i64: 96, 64>}, {pipeline_mode = #tpu.pipeline_mode<synchronous>, transform_indices = @transform_2, window_bounds = array<i64: 1, 64>}, {pipeline_mode = #tpu.pipeline_mode<synchronous>, transform_indices = @transform_3, window_bounds = array<i64: 64, 16>}, {pipeline_mode = #tpu.pipeline_mode<synchronous>, transform_indices = @transform_4, window_bounds = array<i64: 1, 16>}, {transform_indices = @transform_5, window_bounds = array<i64: 1, 128, 16>}, {transform_indices = @transform_6, window_bounds = array<i64: 1, 1, 128>}]} {
    %c0 = arith.constant 0 : index
    %c0_0 = arith.constant 0 : index
    %c0_1 = arith.constant 0 : index
    %0 = vector.load %arg1[%c0, %c0_0, %c0_1] : memref<1x128x96xbf16, #tpu.memory_space<vmem>>, vector<1x128x96xbf16>
    %1 = vector.shape_cast %0 : vector<1x128x96xbf16> to vector<128x96xbf16>
    %c0_2 = arith.constant 0 : index
    %c0_3 = arith.constant 0 : index
    %2 = vector.load %arg2[%c0_2, %c0_3] : memref<96x64xbf16, #tpu.memory_space<vmem>>, vector<96x64xbf16>
    %cst = arith.constant dense<0.000000e+00> : vector<128x64xf32>
    %3 = tpu.matmul %1, %2, %cst {dimension_numbers = #tpu.dot_dimension_numbers<[1], [0], [0], [1], [0, 0, 1, 1], [], []>} : vector<128x96xbf16>, vector<96x64xbf16>, vector<128x64xf32> -> vector<128x64xf32>
    %c0_4 = arith.constant 0 : index
    %c0_5 = arith.constant 0 : index
    %4 = vector.load %arg3[%c0_4, %c0_5] : memref<1x64xf32, #tpu.memory_space<vmem>>, vector<1x64xf32>
    %5 = vector.broadcast %4 : vector<1x64xf32> to vector<128x64xf32>
    %6 = arith.addf %3, %5 : vector<128x64xf32>
    %cst_6 = arith.constant 0.000000e+00 : f32
    %7 = vector.broadcast %cst_6 : f32 to vector<128x64xf32>
    %8 = arith.maximumf %6, %7 : vector<128x64xf32>
    %9 = arith.truncf %8 : vector<128x64xf32> to vector<128x64xbf16>
    %c0_7 = arith.constant 0 : index
    %c0_8 = arith.constant 0 : index
    %10 = vector.load %arg4[%c0_7, %c0_8] : memref<64x16xbf16, #tpu.memory_space<vmem>>, vector<64x16xbf16>
    %cst_9 = arith.constant dense<0.000000e+00> : vector<128x16xf32>
    %11 = tpu.matmul %9, %10, %cst_9 {dimension_numbers = #tpu.dot_dimension_numbers<[1], [0], [0], [1], [0, 0, 1, 1], [], []>} : vector<128x64xbf16>, vector<64x16xbf16>, vector<128x16xf32> -> vector<128x16xf32>
    %c0_10 = arith.constant 0 : index
    %c0_11 = arith.constant 0 : index
    %12 = vector.load %arg5[%c0_10, %c0_11] : memref<1x16xf32, #tpu.memory_space<vmem>>, vector<1x16xf32>
    %13 = vector.broadcast %12 : vector<1x16xf32> to vector<128x16xf32>
    %14 = arith.addf %11, %13 : vector<128x16xf32>
    %cst_12 = arith.constant 0.0447213612 : f32
    %15 = vector.broadcast %cst_12 : f32 to vector<128x16xf32>
    %16 = arith.mulf %15, %14 : vector<128x16xf32>
    %17 = arith.truncf %16 : vector<128x16xf32> to vector<128x16xbf16>
    %c0_13 = arith.constant 0 : index
    %c0_14 = arith.constant 0 : index
    %c0_15 = arith.constant 0 : index
    %18 = vector.load %arg6[%c0_13, %c0_14, %c0_15] : memref<1x128x16xbf16, #tpu.memory_space<vmem>>, vector<1x128x16xbf16>
    %19 = vector.shape_cast %18 : vector<1x128x16xbf16> to vector<128x16xbf16>
    %20 = vector.shape_cast %17 : vector<128x16xbf16> to vector<1x128x16xbf16>
    tpu.vector_store %arg6[%c0_13, %c0_14, %c0_15], %20 {strides = array<i32>} : memref<1x128x16xbf16, #tpu.memory_space<vmem>>, vector<1x128x16xbf16>,
    %21 = arith.mulf %14, %14 : vector<128x16xf32>
    %cst_16 = arith.constant dense<0.000000e+00> : vector<128xf32>
    %22 = vector.multi_reduction <add>, %21, %cst_16 [1] : vector<128x16xf32> to vector<128xf32>
    %23 = vector.shape_cast %22 : vector<128xf32> to vector<128x1xf32>
    %cst_17 = arith.constant 5.000000e-04 : f32
    %24 = vector.broadcast %cst_17 : f32 to vector<128x1xf32>
    %25 = arith.mulf %24, %23 : vector<128x1xf32>
    %26 = tpu.transpose %25, [1, 0] : vector<128x1xf32> -> vector<1x128xf32>
    %27 = tpu.iota {dimensions = array<i32: 1>} : vector<1x128xi32>
    %c8_i32 = arith.constant 8 : i32
    %28 = vector.broadcast %c8_i32 : i32 to vector<1x128xi32>
    %29 = arith.cmpi slt, %27, %28 : vector<1x128xi32>
    %cst_18 = arith.constant 1.000000e+30 : f32
    %30 = vector.broadcast %cst_18 : f32 to vector<1x128xf32>
    %31 = arith.addf %26, %30 : vector<1x128xf32>
    %32 = arith.select %29, %26, %31 : vector<1x128xi1>, vector<1x128xf32>
    %c0_19 = arith.constant 0 : index
    %c0_20 = arith.constant 0 : index
    %c0_21 = arith.constant 0 : index
    %33 = vector.load %arg7[%c0_19, %c0_20, %c0_21] : memref<1x1x128xf32, #tpu.memory_space<vmem>>, vector<1x1x128xf32>
    %34 = vector.shape_cast %33 : vector<1x1x128xf32> to vector<1x128xf32>
    %35 = vector.shape_cast %32 : vector<1x128xf32> to vector<1x1x128xf32>
    tpu.vector_store %arg7[%c0_19, %c0_20, %c0_21], %35 {strides = array<i32>} : memref<1x1x128xf32, #tpu.memory_space<vmem>>, vector<1x1x128xf32>,
    return
  }
  func.func @transform_0(%arg0: i32) -> (i32, i32, i32) {
    %c0_i32 = arith.constant 0 : i32
    %c0_i32_0 = arith.constant 0 : i32
    %c0_i32_1 = arith.constant 0 : i32
    return %arg0, %c0_i32, %c0_i32_0 : i32, i32, i32
  }
  func.func @transform_1(%arg0: i32) -> (i32, i32) {
    %c0_i32 = arith.constant 0 : i32
    %c0_i32_0 = arith.constant 0 : i32
    %c0_i32_1 = arith.constant 0 : i32
    return %c0_i32, %c0_i32_0 : i32, i32
  }
  func.func @transform_2(%arg0: i32) -> (i32, i32) {
    %c0_i32 = arith.constant 0 : i32
    %c0_i32_0 = arith.constant 0 : i32
    %c0_i32_1 = arith.constant 0 : i32
    return %c0_i32, %c0_i32_0 : i32, i32
  }
  func.func @transform_3(%arg0: i32) -> (i32, i32) {
    %c0_i32 = arith.constant 0 : i32
    %c0_i32_0 = arith.constant 0 : i32
    %c0_i32_1 = arith.constant 0 : i32
    return %c0_i32, %c0_i32_0 : i32, i32
  }
  func.func @transform_4(%arg0: i32) -> (i32, i32) {
    %c0_i32 = arith.constant 0 : i32
    %c0_i32_0 = arith.constant 0 : i32
    %c0_i32_1 = arith.constant 0 : i32
    return %c0_i32, %c0_i32_0 : i32, i32
  }
  func.func @transform_5(%arg0: i32) -> (i32, i32, i32) {
    %c0_i32 = arith.constant 0 : i32
    %c0_i32_0 = arith.constant 0 : i32
    %c0_i32_1 = arith.constant 0 : i32
    return %arg0, %c0_i32, %c0_i32_0 : i32, i32, i32
  }
  func.func @transform_6(%arg0: i32) -> (i32, i32, i32) {
    %c0_i32 = arith.constant 0 : i32
    %c0_i32_0 = arith.constant 0 : i32
    %c0_i32_1 = arith.constant 0 : i32
    return %arg0, %c0_i32, %c0_i32_0 : i32, i32, i32
  }
}

</mosaic_0001>

<llo_original>
// kernel: tpu_custom_call.1
$region0: #{tpu_custom_call.1}
  #allocation0 [shape = 'u32[]', space=smem, size = 0x4, offset = 0x4, fixed_abs, tag = 'smem constant byte address 0x4 - core index']
  #allocation1 [shape = 'u32[144,128]{1,0:T(1,128)}', space=vmem, size = 0x12000, scoped, tag = 'internal scratch']
  %s0 = inlined_call_operand.vmem [shape: bf16[2,128,96], index: 0, kind: input, shape index: {}]
  %s1 = inlined_call_operand.vmem [shape: bf16[96,64], index: 1, kind: input, shape index: {}]
  %s2 = inlined_call_operand.vmem [shape: f32[1,64], index: 2, kind: input, shape index: {}]
  %s3 = inlined_call_operand.vmem [shape: bf16[64,16], index: 3, kind: input, shape index: {}]
  %s4 = inlined_call_operand.vmem [shape: f32[1,16], index: 4, kind: input, shape index: {}]
  %s5 = inlined_call_operand.vmem [shape: bf16[2,128,16], index: 5, kind: output, shape index: {0}]
  %s6 = inlined_call_operand.hbm [shape: f32[2,1,128], index: 6, kind: output, shape index: {1}]
  %7 = xla_tuple %s5, %s6
  %s8 = sld [smem:[#allocation0]]
  $region61: #{tpu_custom_call.1} parent=0
    _
  %s10 = ssub.s32 1, %s8
  %s11 = scalar_select 0, %s10, %s8
  $region1: #{tpu_custom_call.1} parent=0
    #allocation2 [shape = 'u8[1024]{0}', space=vmem, size = 0x400, scoped, tag = 'output window, operand 1']
    #allocation3 [shape = 's32[2]{0}', space=sflag, size = 0x8, scoped, tag = 'scoped memory for tpu_custom_call.1']
    %12 = vsyncpa [#allocation3], 0
    %s13 = scalar_lea.sflag [#allocation3], 1
    %14 = vsyncpa %s13, 0
    loop: start=0, step=1, limit=4
    $region2: #{tpu_custom_call.1} parent=1 // loop_pre_header
      _
    $region3: #{tpu_custom_call.1} parent=1 // loop_header
      %s16 = sphi 0, %s20
      %p17 = scmp.ge.s32.totalorder %s16, 4
      %s26 = sphi 0, %s28
      %s29 = sphi 0, %s26
      %s30 = sphi 0, %s29
      %s46 = sphi 0, %s30
      %s50 = sphi 0, %s50
      %s52 = sphi 0, %s50
      %s53 = sphi 0, %s52
      %s67 = sphi 0, %s53
      %s71 = sphi 0, %s71
      %s73 = sphi 0, %s71
      %s74 = sphi 0, %s73
      %s88 = sphi 0, %s74
      %s92 = sphi 0, %s92
      %s94 = sphi 0, %s92
      %s95 = sphi 0, %s94
      %s109 = sphi 0, %s95
      %s113 = sphi 0, %s113
      %s115 = sphi 0, %s113
      %s116 = sphi 0, %s115
      %s130 = sphi 0, %s116
      %s136 = sphi 0, %s138
      %s139 = sphi 0, %s136
      %s140 = sphi 0, %s139
      %s156 = sphi 0, %s140
      %s162 = sphi 0, %s164
      %s165 = sphi 0, %s162
      %s166 = sphi 0, %s165
      %s182 = sphi 0, %s166
    $region4: #{tpu_custom_call.1} parent=1 // loop_header_branch
      %19 = sbr.rel (%p17) target = $region8
    $region5: #{tpu_custom_call.1} parent=1 // loop_body
      %s21 = ssub.s32 %s16, 1
      %s22 = ssub.s32 %s16, 2
      %s23 = sadd.s32 %s16, 1
      %s24 = ssub.s32 %s16, %s23
      %p25 = scmp.eq.s32.totalorder %s24, 0
      %s27 = sadd.s32 %s26, 1
      %s28 = scalar_select %p25, %s26, %s27
      %p31 = pneg %p25
      %p32 = scmp.eq.s32.totalorder %s16, 1
      %p33 = por %p31, %p32
      %p34 = scmp.ne.s32.totalorder %s26, %s29
      %p35 = scmp.eq.s32.totalorder %s16, 0
      %p36 = por %p34, %p35
      %p37 = scmp.ne.s32.totalorder %s26, %s29
      %p38 = scmp.eq.s32.totalorder %s21, 1
      %p39 = por %p37, %p38
      %p40 = scmp.ne.s32.totalorder %s29, %s30
      %p41 = scmp.eq.s32.totalorder %s21, 0
      %p42 = por %p40, %p41
      %p43 = scmp.ne.s32.totalorder %s29, %s30
      %p44 = scmp.eq.s32.totalorder %s22, 1
      %p45 = por %p43, %p44
      %p47 = scmp.ne.s32.totalorder %s30, %s46
      %p48 = scmp.eq.s32.totalorder %s22, 0
      %p49 = por %p47, %p48
      %s51 = sadd.s32 %s50, 1
      %p54 = scmp.eq.s32.totalorder %s16, 1
      %p55 = scmp.ne.s32.totalorder %s50, %s52
      %p56 = scmp.eq.s32.totalorder %s16, 0
      %p57 = por %p55, %p56
      %p58 = scmp.ne.s32.totalorder %s50, %s52
      %p59 = scmp.eq.s32.totalorder %s21, 1
      %p60 = por %p58, %p59
      %p61 = scmp.ne.s32.totalorder %s52, %s53
      %p62 = scmp.eq.s32.totalorder %s21, 0
      %p63 = por %p61, %p62
      %p64 = scmp.ne.s32.totalorder %s52, %s53
      %p65 = scmp.eq.s32.totalorder %s22, 1
      %p66 = por %p64, %p65
      %p68 = scmp.ne.s32.totalorder %s53, %s67
      %p69 = scmp.eq.s32.totalorder %s22, 0
      %p70 = por %p68, %p69
      %s72 = sadd.s32 %s71, 1
      %p75 = scmp.eq.s32.totalorder %s16, 1
      %p76 = scmp.ne.s32.totalorder %s71, %s73
      %p77 = scmp.eq.s32.totalorder %s16, 0
      %p78 = por %p76, %p77
      %p79 = scmp.ne.s32.totalorder %s71, %s73
      %p80 = scmp.eq.s32.totalorder %s21, 1
      %p81 = por %p79, %p80
      %p82 = scmp.ne.s32.totalorder %s73, %s74
      %p83 = scmp.eq.s32.totalorder %s21, 0
      %p84 = por %p82, %p83
      %p85 = scmp.ne.s32.totalorder %s73, %s74
      %p86 = scmp.eq.s32.totalorder %s22, 1
      %p87 = por %p85, %p86
      %p89 = scmp.ne.s32.totalorder %s74, %s88
      %p90 = scmp.eq.s32.totalorder %s22, 0
      %p91 = por %p89, %p90
      %s93 = sadd.s32 %s92, 1
      %p96 = scmp.eq.s32.totalorder %s16, 1
      %p97 = scmp.ne.s32.totalorder %s92, %s94
      %p98 = scmp.eq.s32.totalorder %s16, 0
      %p99 = por %p97, %p98
      %p100 = scmp.ne.s32.totalorder %s92, %s94
      %p101 = scmp.eq.s32.totalorder %s21, 1
      %p102 = por %p100, %p101
      %p103 = scmp.ne.s32.totalorder %s94, %s95
      %p104 = scmp.eq.s32.totalorder %s21, 0
      %p105 = por %p103, %p104
      %p106 = scmp.ne.s32.totalorder %s94, %s95
      %p107 = scmp.eq.s32.totalorder %s22, 1
      %p108 = por %p106, %p107
      %p110 = scmp.ne.s32.totalorder %s95, %s109
      %p111 = scmp.eq.s32.totalorder %s22, 0
      %p112 = por %p110, %p111
      %s114 = sadd.s32 %s113, 1
      %p117 = scmp.eq.s32.totalorder %s16, 1
      %p118 = scmp.ne.s32.totalorder %s113, %s115
      %p119 = scmp.eq.s32.totalorder %s16, 0
      %p120 = por %p118, %p119
      %p121 = scmp.ne.s32.totalorder %s113, %s115
      %p122 = scmp.eq.s32.totalorder %s21, 1
      %p123 = por %p121, %p122
      %p124 = scmp.ne.s32.totalorder %s115, %s116
      %p125 = scmp.eq.s32.totalorder %s21, 0
      %p126 = por %p124, %p125
      %p127 = scmp.ne.s32.totalorder %s115, %s116
      %p128 = scmp.eq.s32.totalorder %s22, 1
      %p129 = por %p127, %p128
      %p131 = scmp.ne.s32.totalorder %s116, %s130
      %p132 = scmp.eq.s32.totalorder %s22, 0
      %p133 = por %p131, %p132
      %s134 = ssub.s32 %s16, %s23
      %p135 = scmp.eq.s32.totalorder %s134, 0
      %s137 = sadd.s32 %s136, 1
      %s138 = scalar_select %p135, %s136, %s137
      %p141 = pneg %p135
      %p142 = scmp.eq.s32.totalorder %s16, 1
      %p143 = por %p141, %p142
      %p144 = scmp.ne.s32.totalorder %s136, %s139
      %p145 = scmp.eq.s32.totalorder %s16, 0
      %p146 = por %p144, %p145
      %p147 = scmp.ne.s32.totalorder %s136, %s139
      %p148 = scmp.eq.s32.totalorder %s21, 1
      %p149 = por %p147, %p148
      %p150 = scmp.ne.s32.totalorder %s139, %s140
      %p151 = scmp.eq.s32.totalorder %s21, 0
      %p152 = por %p150, %p151
      %p153 = scmp.ne.s32.totalorder %s139, %s140
      %p154 = scmp.eq.s32.totalorder %s22, 1
      %p155 = por %p153, %p154
      %p157 = scmp.ne.s32.totalorder %s140, %s156
      %p158 = scmp.eq.s32.totalorder %s22, 0
      %p159 = por %p157, %p158
      %s160 = ssub.s32 %s16, %s23
      %p161 = scmp.eq.s32.totalorder %s160, 0
      %s163 = sadd.s32 %s162, 1
      %s164 = scalar_select %p161, %s162, %s163
      %p167 = pneg %p161
      %p168 = scmp.eq.s32.totalorder %s16, 1
      %p169 = por %p167, %p168
      %p170 = scmp.ne.s32.totalorder %s162, %s165
      %p171 = scmp.eq.s32.totalorder %s16, 0
      %p172 = por %p170, %p171
      %p173 = scmp.ne.s32.totalorder %s162, %s165
      %p174 = scmp.eq.s32.totalorder %s21, 1
      %p175 = por %p173, %p174
      %p176 = scmp.ne.s32.totalorder %s165, %s166
      %p177 = scmp.eq.s32.totalorder %s21, 0
      %p178 = por %p176, %p177
      %p179 = scmp.ne.s32.totalorder %s165, %s166
      %p180 = scmp.eq.s32.totalorder %s22, 1
      %p181 = por %p179, %p180
      %p183 = scmp.ne.s32.totalorder %s166, %s182
      %p184 = scmp.eq.s32.totalorder %s22, 0
      %p185 = por %p183, %p184
      %p186 = scmp.le.s32.totalorder 1, %s16
      %p187 = scmp.lt.s32.totalorder %s16, 3
      %p188 = pnand %p186, %p187
      %p189 = pneg %p188
      // Predicated region
      $region9: #{tpu_custom_call.1} parent=5 // pred_check
        _
      $region10: #{tpu_custom_call.1} parent=5 // pred_check_branch
        %191 = sbr.rel (%p188) target = $region12
      $region11: #{tpu_custom_call.1} parent=5 // pred_region
        %s192 = ssub.s32 %s16, 1
        // Predicated region
        $region13: #{tpu_custom_call.1} parent=11 // pred_check
          %p193 = pneg %p63
        $region14: #{tpu_custom_call.1} parent=11 // pred_check_branch
          %195 = sbr.rel (%p193) target = $region16
        $region15: #{tpu_custom_call.1} parent=11 // pred_region
          _
        $region16: #{tpu_custom_call.1} parent=11 // pred_fallthru
          _
        // Predicated region
        $region17: #{tpu_custom_call.1} parent=11 // pred_check
          %p196 = pneg %p84
        $region18: #{tpu_custom_call.1} parent=11 // pred_check_branch
          %198 = sbr.rel (%p196) target = $region20
        $region19: #{tpu_custom_call.1} parent=11 // pred_region
          _
        $region20: #{tpu_custom_call.1} parent=11 // pred_fallthru
          _
        // Predicated region
        $region21: #{tpu_custom_call.1} parent=11 // pred_check
          %p199 = pneg %p105
        $region22: #{tpu_custom_call.1} parent=11 // pred_check_branch
          %201 = sbr.rel (%p199) target = $region24
        $region23: #{tpu_custom_call.1} parent=11 // pred_region
          _
        $region24: #{tpu_custom_call.1} parent=11 // pred_fallthru
          _
        // Predicated region
        $region25: #{tpu_custom_call.1} parent=11 // pred_check
          %p202 = pneg %p126
        $region26: #{tpu_custom_call.1} parent=11 // pred_check_branch
          %204 = sbr.rel (%p202) target = $region28
        $region27: #{tpu_custom_call.1} parent=11 // pred_region
          _
        $region28: #{tpu_custom_call.1} parent=11 // pred_fallthru
          _
      $region12: #{tpu_custom_call.1} parent=5 // pred_fallthru
        _
      %p205 = scmp.lt.s32.totalorder %s16, 2
      // Predicated region
      $region29: #{tpu_custom_call.1} parent=5 // pred_check
        %p206 = pneg %p205
      $region30: #{tpu_custom_call.1} parent=5 // pred_check_branch
        %208 = sbr.rel (%p206) target = $region32
      $region31: #{tpu_custom_call.1} parent=5 // pred_region
        // Predicated region
        $region33: #{tpu_custom_call.1} parent=31 // pred_check
          %p209 = pneg %p36
        $region34: #{tpu_custom_call.1} parent=31 // pred_check_branch
          %211 = sbr.rel (%p209) target = $region36
        $region35: #{tpu_custom_call.1} parent=31 // pred_region
          %p212 = scmp.lt.s32.totalorder %s16, 1
          %s213 = scalar_select %p212, %s16, 1
          %s214 = smul.addr %s213, 16
          %s215 = smul.addr %s214, 4
          %s216 = scalar_lea.vmem %s0, %s215
        $region36: #{tpu_custom_call.1} parent=31 // pred_fallthru
          _
      $region32: #{tpu_custom_call.1} parent=5 // pred_fallthru
        _
      %p217 = scmp.le.s32.totalorder 1, %s16
      %p218 = scmp.lt.s32.totalorder %s16, 3
      %p219 = pnand %p217, %p218
      %p220 = pneg %p219
      // Predicated region
      $region37: #{tpu_custom_call.1} parent=5 // pred_check
        _
      $region38: #{tpu_custom_call.1} parent=5 // pred_check_branch
        %222 = sbr.rel (%p219) target = $region40
      $region39: #{tpu_custom_call.1} parent=5 // pred_region
        %s223 = ssub.s32 %s16, 1
        %p224 = scmp.lt.s32.totalorder %s21, 1
        %s225 = scalar_select %p224, %s21, 1
        %s226 = smul.addr %s225, 16
        %s227 = smul.addr %s226, 4
        %s228 = scalar_lea.vmem %s0, %s227
        %p229 = pneg %p42
        %p230 = pneg %p39
        %p231 = pneg %p63
        %p232 = pneg %p60
        %p233 = pneg %p84
        %p234 = pneg %p81
        %p235 = pneg %p105
        %p236 = pneg %p102
        %p237 = pneg %p126
        %p238 = pneg %p123
        %p239 = pneg %p152
        %p240 = pneg %p149
        %p241 = scmp.lt.s32.totalorder %s21, 1
        %s242 = scalar_select %p241, %s21, 1
        %s243 = smul.addr %s242, 16
        %s244 = smul.addr %s243, 4
        %s245 = scalar_lea.vmem %s5, %s244
        %p246 = pneg %p178
        %p247 = pneg %p175
        %s248 = sand.u32 %s165, 1
        %s249 = scalar_lea.sflag [#allocation3], %s248
        %s250 = sand.u32 %s165, 1
        %s251 = scalar_lea.vmem [#allocation2], %s250
        %p252 = scmp.lt.s32.totalorder %s21, 1
        %s253 = scalar_select %p252, %s21, 1
        %s254 = smul.addr %s253, 16
        %s255 = smul.addr %s254, 4
        %s256 = scalar_lea.vmem %s0, %s255
        %p257 = scmp.lt.s32.totalorder %s21, 1
        %s258 = scalar_select %p257, %s21, 1
        %s259 = smul.addr %s258, 16
        %s260 = smul.addr %s259, 4
        %s261 = scalar_lea.vmem %s5, %s260
        %v263 = vld [vmem:[%s256] sm:$0xf]
        %v264 = vld [vmem:[%s256 + $0x4] sm:$0xf]
        %v265 = vld [vmem:[%s256 + $0x8] sm:$0xf]
        %v266 = vld [vmem:[%s256 + $0xc] sm:$0xf]
        %v267 = vld [vmem:[%s256 + $0x10] sm:$0xf]
        %v268 = vld [vmem:[%s256 + $0x14] sm:$0xf]
        %v269 = vld [vmem:[%s256 + $0x18] sm:$0xf]
        %v270 = vld [vmem:[%s256 + $0x1c] sm:$0xf]
        %v271 = vld [vmem:[%s256 + $0x20] sm:$0xf]
        %v272 = vld [vmem:[%s256 + $0x24] sm:$0xf]
        %v273 = vld [vmem:[%s256 + $0x28] sm:$0xf]
        %v274 = vld [vmem:[%s256 + $0x2c] sm:$0xf]
        %v275 = vld [vmem:[%s256 + $0x30] sm:$0xf]
        %v276 = vld [vmem:[%s256 + $0x34] sm:$0xf]
        %v277 = vld [vmem:[%s256 + $0x38] sm:$0xf]
        %v278 = vld [vmem:[%s256 + $0x3c] sm:$0xf]
        %v279 = vld [vmem:[%s1] sm:$0xf]
        %v280 = vld [vmem:[%s1 + $0x4] sm:$0xf]
        %v281 = vld [vmem:[%s1 + $0x8] sm:$0xf]
        %v282 = vld [vmem:[%s1 + $0xc] sm:$0xf]
        %v283 = vld [vmem:[%s1 + $0x10] sm:$0xf]
        %v284 = vld [vmem:[%s1 + $0x14] sm:$0xf]
        %v285 = vld [vmem:[%s1 + $0x18] sm:$0xf]
        %v286 = vld [vmem:[%s1 + $0x1c] sm:$0xf]
        %v287 = vld [vmem:[%s1 + $0x20] sm:$0xf]
        %v288 = vld [vmem:[%s1 + $0x24] sm:$0xf]
        %v289 = vld [vmem:[%s1 + $0x28] sm:$0xf]
        %v290 = vld [vmem:[%s1 + $0x2c] sm:$0xf]
        %v291 = vld [vmem:[%s2] sm:$0x1]
        %v293 = vlaneseq
        %v294 = vshrl.u32 %v293, 7
        %v295 = vsub.s32 0, %v294
        %v296 = vrot.slane %v291, %v295
        %v314 = vunpack.c.l.b16 %v263
        %v315 = vunpack.c.l.b16 %v264
        %v316 = vunpack.c.l.b16 %v265
        %v317 = vunpack.c.l.b16 %v266
        %v318 = vunpack.c.l.b16 %v267
        %v319 = vunpack.c.l.b16 %v268
        %v320 = vunpack.c.l.b16 %v269
        %v321 = vunpack.c.l.b16 %v270
        %v322 = vunpack.c.l.b16 %v271
        %v323 = vunpack.c.l.b16 %v272
        %v324 = vunpack.c.l.b16 %v273
        %v325 = vunpack.c.l.b16 %v274
        %v326 = vunpack.c.l.b16 %v275
        %v327 = vunpack.c.l.b16 %v276
        %v328 = vunpack.c.l.b16 %v277
        %v329 = vunpack.c.l.b16 %v278
        %v330 = vpack.c.b16 %v315, %v314
        %v331 = vpack.c.b16 %v317, %v316
        %v332 = vpack.c.b16 %v319, %v318
        %v333 = vpack.c.b16 %v321, %v320
        %v334 = vpack.c.b16 %v323, %v322
        %v335 = vpack.c.b16 %v325, %v324
        %v336 = vpack.c.b16 %v327, %v326
        %v337 = vpack.c.b16 %v329, %v328
        %v350 = vunpack.c.l.b16 %v279
        %v351 = vunpack.c.l.b16 %v280
        %v352 = vunpack.c.l.b16 %v281
        %v353 = vunpack.c.l.b16 %v282
        %v354 = vunpack.c.l.b16 %v283
        %v355 = vunpack.c.l.b16 %v284
        %v356 = vunpack.c.l.b16 %v285
        %v357 = vunpack.c.l.b16 %v286
        %v358 = vunpack.c.l.b16 %v287
        %v359 = vunpack.c.l.b16 %v288
        %v360 = vunpack.c.l.b16 %v289
        %v361 = vunpack.c.l.b16 %v290
        %v362 = vpack.c.b16 %v351, %v350
        %v363 = vpack.c.b16 %v353, %v352
        %v364 = vpack.c.b16 %v355, %v354
        %v365 = vpack.c.b16 %v357, %v356
        %v366 = vpack.c.b16 %v359, %v358
        %v367 = vpack.c.b16 %v361, %v360
        %vm374 = vcmask 785408
        %v376 = vsel %vm374, %v330, 0
        %v379 = vsel %vm374, %v331, 0
        %v382 = vsel %vm374, %v332, 0
        %v385 = vsel %vm374, %v333, 0
        %v388 = vsel %vm374, %v334, 0
        %v391 = vsel %vm374, %v335, 0
        %v394 = vsel %vm374, %v336, 0
        %v397 = vsel %vm374, %v337, 0
        %399 = vmatprep.subr.bf16.mxu0 0
        %400 = vmatpush1.bf16.msra.mxu0 %v362
        %401 = vmatprep.subr.bf16.mxu0 0
        %402 = vmatpush1.bf16.msra.mxu0 %v363
        %403 = vmatprep.subr.bf16.mxu0 0
        %404 = vmatpush1.bf16.msra.mxu0 %v364
        %405 = vmatprep.subr.bf16.mxu0 0
        %406 = vmatpush1.bf16.msra.mxu0 %v365
        %407 = vmatprep.subr.bf16.mxu0 0
        %408 = vmatpush1.bf16.msra.mxu0 %v366
        %409 = vmatprep.subr.bf16.mxu0 0
        %410 = vmatpush1.bf16.msra.mxu0 %v367
        %411 = vmatprep.subr.bf16.mxu0 0
        %412 = vmatpush1.bf16.msra.mxu0 0
        %413 = vmatprep.subr.bf16.mxu0 0
        %414 = vmatpush1.bf16.msra.mxu0 0
        %415 = vmatprep.subr.bf16.mxu0 0
        %416 = vmatpush1.bf16.msra.mxu0 0
        %417 = vmatprep.subr.bf16.mxu0 0
        %418 = vmatpush1.bf16.msra.mxu0 0
        %419 = vmatprep.subr.bf16.mxu0 0
        %420 = vmatpush1.bf16.msra.mxu0 0
        %421 = vmatprep.subr.bf16.mxu0 0
        %422 = vmatpush1.bf16.msra.mxu0 0
        %423 = vmatprep.subr.bf16.mxu0 0
        %424 = vmatpush1.bf16.msra.mxu0 0
        %425 = vmatprep.subr.bf16.mxu0 0
        %426 = vmatpush1.bf16.msra.mxu0 0
        %427 = vmatprep.subr.bf16.mxu0 0
        %428 = vmatpush1.bf16.msra.mxu0 0
        %429 = vmatprep.subr.bf16.mxu0 0
        %430 = vmatpush1.bf16.msra.mxu0 0
        %431 = vmatprep.mubr.bf16.mxu0 0
        %432 = vmatmul.mubr.bf16.gmra.mrb[0].mxu0 %v376
        %v433 = vpop.f32.mrb[0].mxu0
        %v434 = vadd.f32 %v296, %v433
        %v435 = vpop.f32.mrb[0].mxu0
        %v436 = vpop.f32.mrb[0].mxu0
        %v437 = vadd.f32 %v296, %v436
        %v438 = vpop.f32.mrb[0].mxu0
        %439 = vmatprep.mubr.bf16.mxu0 0
        %440 = vmatmul.mubr.bf16.gmra.mrb[0].mxu0 %v379
        %v441 = vpop.f32.mrb[0].mxu0
        %v442 = vadd.f32 %v296, %v441
        %v443 = vpop.f32.mrb[0].mxu0
        %v444 = vpop.f32.mrb[0].mxu0
        %v445 = vadd.f32 %v296, %v444
        %v446 = vpop.f32.mrb[0].mxu0
        %447 = vmatprep.mubr.bf16.mxu0 0
        %448 = vmatmul.mubr.bf16.gmra.mrb[0].mxu0 %v382
        %v449 = vpop.f32.mrb[0].mxu0
        %v450 = vadd.f32 %v296, %v449
        %v451 = vpop.f32.mrb[0].mxu0
        %v452 = vpop.f32.mrb[0].mxu0
        %v453 = vadd.f32 %v296, %v452
        %v454 = vpop.f32.mrb[0].mxu0
        %455 = vmatprep.mubr.bf16.mxu0 0
        %456 = vmatmul.mubr.bf16.gmra.mrb[0].mxu0 %v385
        %v457 = vpop.f32.mrb[0].mxu0
        %v458 = vadd.f32 %v296, %v457
        %v459 = vpop.f32.mrb[0].mxu0
        %v460 = vpop.f32.mrb[0].mxu0
        %v461 = vadd.f32 %v296, %v460
        %v462 = vpop.f32.mrb[0].mxu0
        %463 = vmatprep.mubr.bf16.mxu0 0
        %464 = vmatmul.mubr.bf16.gmra.mrb[0].mxu0 %v388
        %v465 = vpop.f32.mrb[0].mxu0
        %v466 = vadd.f32 %v296, %v465
        %v467 = vpop.f32.mrb[0].mxu0
        %v468 = vpop.f32.mrb[0].mxu0
        %v469 = vadd.f32 %v296, %v468
        %v470 = vpop.f32.mrb[0].mxu0
        %471 = vmatprep.mubr.bf16.mxu0 0
        %472 = vmatmul.mubr.bf16.gmra.mrb[0].mxu0 %v391
        %v473 = vpop.f32.mrb[0].mxu0
        %v474 = vadd.f32 %v296, %v473
        %v475 = vpop.f32.mrb[0].mxu0
        %v476 = vpop.f32.mrb[0].mxu0
        %v477 = vadd.f32 %v296, %v476
        %v478 = vpop.f32.mrb[0].mxu0
        %479 = vmatprep.mubr.bf16.mxu0 0
        %480 = vmatmul.mubr.bf16.gmra.mrb[0].mxu0 %v394
        %v481 = vpop.f32.mrb[0].mxu0
        %v482 = vadd.f32 %v296, %v481
        %v483 = vpop.f32.mrb[0].mxu0
        %v484 = vpop.f32.mrb[0].mxu0
        %v485 = vadd.f32 %v296, %v484
        %v486 = vpop.f32.mrb[0].mxu0
        %487 = vmatprep.mubr.bf16.mxu0 0
        %488 = vmatmul.mubr.bf16.gmra.mrb[0].mxu0 %v397
        %v489 = vpop.f32.mrb[0].mxu0
        %v490 = vadd.f32 %v296, %v489
        %v491 = vpop.f32.mrb[0].mxu0
        %v492 = vpop.f32.mrb[0].mxu0
        %v493 = vadd.f32 %v296, %v492
        %v494 = vpop.f32.mrb[0].mxu0
        %495 = vdwg.mxu0
        %v496 = vmax.f32 %v434, 0.0
        %v497 = vmax.f32 %v437, 0.0
        %v498 = vmax.f32 %v442, 0.0
        %v499 = vmax.f32 %v445, 0.0
        %v500 = vmax.f32 %v450, 0.0
        %v501 = vmax.f32 %v453, 0.0
        %v502 = vmax.f32 %v458, 0.0
        %v503 = vmax.f32 %v461, 0.0
        %v504 = vmax.f32 %v466, 0.0
        %v505 = vmax.f32 %v469, 0.0
        %v506 = vmax.f32 %v474, 0.0
        %v507 = vmax.f32 %v477, 0.0
        %v508 = vmax.f32 %v482, 0.0
        %v509 = vmax.f32 %v485, 0.0
        %v510 = vmax.f32 %v490, 0.0
        %v511 = vmax.f32 %v493, 0.0
        %v512 = vpack.c.bf16 %v497, %v496
        %v513 = vpack.c.bf16 %v499, %v498
        %v514 = vpack.c.bf16 %v501, %v500
        %v515 = vpack.c.bf16 %v503, %v502
        %v516 = vpack.c.bf16 %v505, %v504
        %v517 = vpack.c.bf16 %v507, %v506
        %v518 = vpack.c.bf16 %v509, %v508
        %v519 = vpack.c.bf16 %v511, %v510
        %v520 = vld [vmem:[%s3] sm:$0xf]
        %v521 = vld [vmem:[%s3 + $0x4] sm:$0xf]
        %v522 = vld [vmem:[%s3 + $0x8] sm:$0xf]
        %v523 = vld [vmem:[%s3 + $0xc] sm:$0xf]
        %v524 = vld [vmem:[%s3 + $0x10] sm:$0xf]
        %v525 = vld [vmem:[%s3 + $0x14] sm:$0xf]
        %v526 = vld [vmem:[%s3 + $0x18] sm:$0xf]
        %v527 = vld [vmem:[%s3 + $0x1c] sm:$0xf]
        %v528 = vld [vmem:[%s4] sm:$0x1]
        %v530 = vlaneseq
        %v531 = vshrl.u32 %v530, 7
        %v532 = vsub.s32 0, %v531
        %v533 = vrot.slane %v528, %v532
        %v543 = vunpack.c.l.b16 %v520
        %v544 = vunpack.c.l.b16 %v521
        %v545 = vunpack.c.l.b16 %v522
        %v546 = vunpack.c.l.b16 %v523
        %v547 = vunpack.c.l.b16 %v524
        %v548 = vunpack.c.l.b16 %v525
        %v549 = vunpack.c.l.b16 %v526
        %v550 = vunpack.c.l.b16 %v527
        %v551 = vpack.c.b16 %v544, %v543
        %v552 = vpack.c.b16 %v546, %v545
        %v553 = vpack.c.b16 %v548, %v547
        %v554 = vpack.c.b16 %v550, %v549
        %vm559 = vcmask 523264
        %v561 = vsel %vm559, %v512, 0
        %v564 = vsel %vm559, %v513, 0
        %v567 = vsel %vm559, %v514, 0
        %v570 = vsel %vm559, %v515, 0
        %v573 = vsel %vm559, %v516, 0
        %v576 = vsel %vm559, %v517, 0
        %v579 = vsel %vm559, %v518, 0
        %v582 = vsel %vm559, %v519, 0
        %584 = vmatprep.subr.bf16.mxu0 0
        %585 = vmatpush1.bf16.msra.mxu0 %v551
        %586 = vmatprep.subr.bf16.mxu0 0
        %587 = vmatpush1.bf16.msra.mxu0 %v552
        %588 = vmatprep.subr.bf16.mxu0 0
        %589 = vmatpush1.bf16.msra.mxu0 %v553
        %590 = vmatprep.subr.bf16.mxu0 0
        %591 = vmatpush1.bf16.msra.mxu0 %v554
        %592 = vmatprep.subr.bf16.mxu0 0
        %593 = vmatpush1.bf16.msra.mxu0 0
        %594 = vmatprep.subr.bf16.mxu0 0
        %595 = vmatpush1.bf16.msra.mxu0 0
        %596 = vmatprep.subr.bf16.mxu0 0
        %597 = vmatpush1.bf16.msra.mxu0 0
        %598 = vmatprep.subr.bf16.mxu0 0
        %599 = vmatpush1.bf16.msra.mxu0 0
        %600 = vmatprep.subr.bf16.mxu0 0
        %601 = vmatpush1.bf16.msra.mxu0 0
        %602 = vmatprep.subr.bf16.mxu0 0
        %603 = vmatpush1.bf16.msra.mxu0 0
        %604 = vmatprep.subr.bf16.mxu0 0
        %605 = vmatpush1.bf16.msra.mxu0 0
        %606 = vmatprep.subr.bf16.mxu0 0
        %607 = vmatpush1.bf16.msra.mxu0 0
        %608 = vmatprep.subr.bf16.mxu0 0
        %609 = vmatpush1.bf16.msra.mxu0 0
        %610 = vmatprep.subr.bf16.mxu0 0
        %611 = vmatpush1.bf16.msra.mxu0 0
        %612 = vmatprep.subr.bf16.mxu0 0
        %613 = vmatpush1.bf16.msra.mxu0 0
        %614 = vmatprep.subr.bf16.mxu0 0
        %615 = vmatpush1.bf16.msra.mxu0 0
        %616 = vmatprep.mubr.bf16.mxu0 0
        %617 = vmatmul.mubr.bf16.gmra.mrb[0].mxu0 %v561
        %v618 = vpop.f32.mrb[0].mxu0
        %v619 = vadd.f32 %v533, %v618
        %v620 = vpop.f32.mrb[0].mxu0
        %v621 = vpop.f32.mrb[0].mxu0
        %v622 = vadd.f32 %v533, %v621
        %v623 = vpop.f32.mrb[0].mxu0
        %624 = vmatprep.mubr.bf16.mxu0 0
        %625 = vmatmul.mubr.bf16.gmra.mrb[0].mxu0 %v564
        %v626 = vpop.f32.mrb[0].mxu0
        %v627 = vadd.f32 %v533, %v626
        %v628 = vpop.f32.mrb[0].mxu0
        %v629 = vpop.f32.mrb[0].mxu0
        %v630 = vadd.f32 %v533, %v629
        %v631 = vpop.f32.mrb[0].mxu0
        %632 = vmatprep.mubr.bf16.mxu0 0
        %633 = vmatmul.mubr.bf16.gmra.mrb[0].mxu0 %v567
        %v634 = vpop.f32.mrb[0].mxu0
        %v635 = vadd.f32 %v533, %v634
        %v636 = vpop.f32.mrb[0].mxu0
        %v637 = vpop.f32.mrb[0].mxu0
        %v638 = vadd.f32 %v533, %v637
        %v639 = vpop.f32.mrb[0].mxu0
        %640 = vmatprep.mubr.bf16.mxu0 0
        %641 = vmatmul.mubr.bf16.gmra.mrb[0].mxu0 %v570
        %v642 = vpop.f32.mrb[0].mxu0
        %v643 = vadd.f32 %v533, %v642
        %v644 = vpop.f32.mrb[0].mxu0
        %v645 = vpop.f32.mrb[0].mxu0
        %v646 = vadd.f32 %v533, %v645
        %v647 = vpop.f32.mrb[0].mxu0
        %648 = vmatprep.mubr.bf16.mxu0 0
        %649 = vmatmul.mubr.bf16.gmra.mrb[0].mxu0 %v573
        %v650 = vpop.f32.mrb[0].mxu0
        %v651 = vadd.f32 %v533, %v650
        %v652 = vpop.f32.mrb[0].mxu0
        %v653 = vpop.f32.mrb[0].mxu0
        %v654 = vadd.f32 %v533, %v653
        %v655 = vpop.f32.mrb[0].mxu0
        %656 = vmatprep.mubr.bf16.mxu0 0
        %657 = vmatmul.mubr.bf16.gmra.mrb[0].mxu0 %v576
        %v658 = vpop.f32.mrb[0].mxu0
        %v659 = vadd.f32 %v533, %v658
        %v660 = vpop.f32.mrb[0].mxu0
        %v661 = vpop.f32.mrb[0].mxu0
        %v662 = vadd.f32 %v533, %v661
        %v663 = vpop.f32.mrb[0].mxu0
        %664 = vmatprep.mubr.bf16.mxu0 0
        %665 = vmatmul.mubr.bf16.gmra.mrb[0].mxu0 %v579
        %v666 = vpop.f32.mrb[0].mxu0
        %v667 = vadd.f32 %v533, %v666
        %v668 = vpop.f32.mrb[0].mxu0
        %v669 = vpop.f32.mrb[0].mxu0
        %v670 = vadd.f32 %v533, %v669
        %v671 = vpop.f32.mrb[0].mxu0
        %672 = vmatprep.mubr.bf16.mxu0 0
        %673 = vmatmul.mubr.bf16.gmra.mrb[0].mxu0 %v582
        %v674 = vpop.f32.mrb[0].mxu0
        %v675 = vadd.f32 %v533, %v674
        %v676 = vpop.f32.mrb[0].mxu0
        %v677 = vpop.f32.mrb[0].mxu0
        %v678 = vadd.f32 %v533, %v677
        %v679 = vpop.f32.mrb[0].mxu0
        %680 = vdwg.mxu0
        %v681 = vmul.f32 %v619, 0.04472136
        %v682 = vmul.f32 %v622, 0.04472136
        %v683 = vmul.f32 %v627, 0.04472136
        %v684 = vmul.f32 %v630, 0.04472136
        %v685 = vmul.f32 %v635, 0.04472136
        %v686 = vmul.f32 %v638, 0.04472136
        %v687 = vmul.f32 %v643, 0.04472136
        %v688 = vmul.f32 %v646, 0.04472136
        %v689 = vmul.f32 %v651, 0.04472136
        %v690 = vmul.f32 %v654, 0.04472136
        %v691 = vmul.f32 %v659, 0.04472136
        %v692 = vmul.f32 %v662, 0.04472136
        %v693 = vmul.f32 %v667, 0.04472136
        %v694 = vmul.f32 %v670, 0.04472136
        %v695 = vmul.f32 %v675, 0.04472136
        %v696 = vmul.f32 %v678, 0.04472136
        %v697 = vpack.c.bf16 %v682, %v681
        %v698 = vpack.c.bf16 %v684, %v683
        %v699 = vpack.c.bf16 %v686, %v685
        %v700 = vpack.c.bf16 %v688, %v687
        %v701 = vpack.c.bf16 %v690, %v689
        %v702 = vpack.c.bf16 %v692, %v691
        %v703 = vpack.c.bf16 %v694, %v693
        %v704 = vpack.c.bf16 %v696, %v695
        %v713 = vunpack.c.l.b16 %v697
        %v714 = vunpack.c.h.b16 %v697
        %v715 = vunpack.c.l.b16 %v698
        %v716 = vunpack.c.h.b16 %v698
        %v717 = vunpack.c.l.b16 %v699
        %v718 = vunpack.c.h.b16 %v699
        %v719 = vunpack.c.l.b16 %v700
        %v720 = vunpack.c.h.b16 %v700
        %v721 = vunpack.c.l.b16 %v701
        %v722 = vunpack.c.h.b16 %v701
        %v723 = vunpack.c.l.b16 %v702
        %v724 = vunpack.c.h.b16 %v702
        %v725 = vunpack.c.l.b16 %v703
        %v726 = vunpack.c.h.b16 %v703
        %v727 = vunpack.c.l.b16 %v704
        %v728 = vunpack.c.h.b16 %v704
        %v729 = vpack.c.b16 %v713, %v713
        %v730 = vpack.c.b16 %v714, %v714
        %v731 = vpack.c.b16 %v715, %v715
        %v732 = vpack.c.b16 %v716, %v716
        %v733 = vpack.c.b16 %v717, %v717
        %v734 = vpack.c.b16 %v718, %v718
        %v735 = vpack.c.b16 %v719, %v719
        %v736 = vpack.c.b16 %v720, %v720
        %v737 = vpack.c.b16 %v721, %v721
        %v738 = vpack.c.b16 %v722, %v722
        %v739 = vpack.c.b16 %v723, %v723
        %v740 = vpack.c.b16 %v724, %v724
        %v741 = vpack.c.b16 %v725, %v725
        %v742 = vpack.c.b16 %v726, %v726
        %v743 = vpack.c.b16 %v727, %v727
        %v744 = vpack.c.b16 %v728, %v728
        %vm761 = vcmask 125952
        %762 = vst.msk [vmem:[%s261] sm:$0xf] %vm761, %v729
        %763 = vst.msk [vmem:[%s261 + $0x4] sm:$0xf] %vm761, %v730
        %764 = vst.msk [vmem:[%s261 + $0x8] sm:$0xf] %vm761, %v731
        %765 = vst.msk [vmem:[%s261 + $0xc] sm:$0xf] %vm761, %v732
        %766 = vst.msk [vmem:[%s261 + $0x10] sm:$0xf] %vm761, %v733
        %767 = vst.msk [vmem:[%s261 + $0x14] sm:$0xf] %vm761, %v734
        %768 = vst.msk [vmem:[%s261 + $0x18] sm:$0xf] %vm761, %v735
        %769 = vst.msk [vmem:[%s261 + $0x1c] sm:$0xf] %vm761, %v736
        %770 = vst.msk [vmem:[%s261 + $0x20] sm:$0xf] %vm761, %v737
        %771 = vst.msk [vmem:[%s261 + $0x24] sm:$0xf] %vm761, %v738
        %772 = vst.msk [vmem:[%s261 + $0x28] sm:$0xf] %vm761, %v739
        %773 = vst.msk [vmem:[%s261 + $0x2c] sm:$0xf] %vm761, %v740
        %774 = vst.msk [vmem:[%s261 + $0x30] sm:$0xf] %vm761, %v741
        %775 = vst.msk [vmem:[%s261 + $0x34] sm:$0xf] %vm761, %v742
        %776 = vst.msk [vmem:[%s261 + $0x38] sm:$0xf] %vm761, %v743
        %777 = vst.msk [vmem:[%s261 + $0x3c] sm:$0xf] %vm761, %v744
        %v778 = vmul.f32 %v619, %v619
        %v779 = vmul.f32 %v622, %v622
        %v780 = vmul.f32 %v627, %v627
        %v781 = vmul.f32 %v630, %v630
        %v782 = vmul.f32 %v635, %v635
        %v783 = vmul.f32 %v638, %v638
        %v784 = vmul.f32 %v643, %v643
        %v785 = vmul.f32 %v646, %v646
        %v786 = vmul.f32 %v651, %v651
        %v787 = vmul.f32 %v654, %v654
        %v788 = vmul.f32 %v659, %v659
        %v789 = vmul.f32 %v662, %v662
        %v790 = vmul.f32 %v667, %v667
        %v791 = vmul.f32 %v670, %v670
        %v792 = vmul.f32 %v675, %v675
        %v793 = vmul.f32 %v678, %v678
        %vm794 = vcmask 130048
        %v795 = vsel %vm794, %v778, 0.0
        %796 = vadd.xlane.f32.xlu0 %v795
        %v797 = vpop.xlane.xlu0 %796
        %v798 = vsel %vm794, %v779, 0.0
        %799 = vadd.xlane.f32.xlu0 %v798
        %v800 = vpop.xlane.xlu0 %799
        %v801 = vsel %vm794, %v780, 0.0
        %802 = vadd.xlane.f32.xlu0 %v801
        %v803 = vpop.xlane.xlu0 %802
        %v804 = vsel %vm794, %v781, 0.0
        %805 = vadd.xlane.f32.xlu0 %v804
        %v806 = vpop.xlane.xlu0 %805
        %v807 = vsel %vm794, %v782, 0.0
        %808 = vadd.xlane.f32.xlu0 %v807
        %v809 = vpop.xlane.xlu0 %808
        %v810 = vsel %vm794, %v783, 0.0
        %811 = vadd.xlane.f32.xlu0 %v810
        %v812 = vpop.xlane.xlu0 %811
        %v813 = vsel %vm794, %v784, 0.0
        %814 = vadd.xlane.f32.xlu0 %v813
        %v815 = vpop.xlane.xlu0 %814
        %v816 = vsel %vm794, %v785, 0.0
        %817 = vadd.xlane.f32.xlu0 %v816
        %v818 = vpop.xlane.xlu0 %817
        %v819 = vsel %vm794, %v786, 0.0
        %820 = vadd.xlane.f32.xlu0 %v819
        %v821 = vpop.xlane.xlu0 %820
        %v822 = vsel %vm794, %v787, 0.0
        %823 = vadd.xlane.f32.xlu0 %v822
        %v824 = vpop.xlane.xlu0 %823
        %v825 = vsel %vm794, %v788, 0.0
        %826 = vadd.xlane.f32.xlu0 %v825
        %v827 = vpop.xlane.xlu0 %826
        %v828 = vsel %vm794, %v789, 0.0
        %829 = vadd.xlane.f32.xlu0 %v828
        %v830 = vpop.xlane.xlu0 %829
        %v831 = vsel %vm794, %v790, 0.0
        %832 = vadd.xlane.f32.xlu0 %v831
        %v833 = vpop.xlane.xlu0 %832
        %v834 = vsel %vm794, %v791, 0.0
        %835 = vadd.xlane.f32.xlu0 %v834
        %v836 = vpop.xlane.xlu0 %835
        %v837 = vsel %vm794, %v792, 0.0
        %838 = vadd.xlane.f32.xlu0 %v837
        %v839 = vpop.xlane.xlu0 %838
        %v840 = vsel %vm794, %v793, 0.0
        %841 = vadd.xlane.f32.xlu0 %v840
        %v842 = vpop.xlane.xlu0 %841
        %v843 = vmul.f32 %v797, 0.0005
        %v844 = vmul.f32 %v800, 0.0005
        %v845 = vmul.f32 %v803, 0.0005
        %v846 = vmul.f32 %v806, 0.0005
        %v847 = vmul.f32 %v809, 0.0005
        %v848 = vmul.f32 %v812, 0.0005
        %v849 = vmul.f32 %v815, 0.0005
        %v850 = vmul.f32 %v818, 0.0005
        %v851 = vmul.f32 %v821, 0.0005
        %v852 = vmul.f32 %v824, 0.0005
        %v853 = vmul.f32 %v827, 0.0005
        %v854 = vmul.f32 %v830, 0.0005
        %v855 = vmul.f32 %v833, 0.0005
        %v856 = vmul.f32 %v836, 0.0005
        %v857 = vmul.f32 %v839, 0.0005
        %v858 = vmul.f32 %v842, 0.0005
        %859 = vxpose.xlu0.b32.start [1/16] %v843, 128
        %860 = vxpose.xlu0.b32.cont [2/16] %v844, 128
        %861 = vxpose.xlu0.b32.cont [3/16] %v845, 128
        %862 = vxpose.xlu0.b32.cont [4/16] %v846, 128
        %863 = vxpose.xlu0.b32.cont [5/16] %v847, 128
        %864 = vxpose.xlu0.b32.cont [6/16] %v848, 128
        %865 = vxpose.xlu0.b32.cont [7/16] %v849, 128
        %866 = vxpose.xlu0.b32.cont [8/16] %v850, 128
        %867 = vxpose.xlu0.b32.cont [9/16] %v851, 128
        %868 = vxpose.xlu0.b32.cont [10/16] %v852, 128
        %869 = vxpose.xlu0.b32.cont [11/16] %v853, 128
        %870 = vxpose.xlu0.b32.cont [12/16] %v854, 128
        %871 = vxpose.xlu0.b32.cont [13/16] %v855, 128
        %872 = vxpose.xlu0.b32.cont [14/16] %v856, 128
        %873 = vxpose.xlu0.b32.cont [15/16] %v857, 128
        %874 = vxpose.xlu0.b32.end [16/16] %v858, 128
        %v875 = vpop.trf.xlu0
        %v876 = vpop.trf.xlu0
        %v877 = vpop.trf.xlu0
        %v878 = vpop.trf.xlu0
        %v879 = vpop.trf.xlu0
        %v880 = vpop.trf.xlu0
        %v881 = vpop.trf.xlu0
        %v882 = vpop.trf.xlu0
        %v883 = vpop.trf.xlu0
        %v884 = vpop.trf.xlu0
        %v885 = vpop.trf.xlu0
        %v886 = vpop.trf.xlu0
        %v887 = vpop.trf.xlu0
        %v888 = vpop.trf.xlu0
        %v889 = vpop.trf.xlu0
        %v890 = vpop.trf.xlu0
        %v891 = vlaneseq
        %v892 = vand.u32 %v891, 127
        %vm893 = vcmp.lt.s32.totalorder %v892, 8
        %v894 = vadd.f32 %v875, 1e+30
        %v895 = vsel %vm893, %v875, %v894
        %896 = vst [vmem:[%s251] sm:$0x1] %v895
        %p897 = scmp.lt.s32.totalorder %s21, 1
        %s898 = scalar_select %p897, %s21, 1
        %s899 = smul.addr %s898, 16
        %s900 = smul.addr %s899, 4
        %s901 = scalar_lea.vmem %s5, %s900
        %s902 = sand.u32 %s165, 1
        %s903 = scalar_lea.sflag [#allocation3], %s902
        %s904 = sand.u32 %s165, 1
        %s905 = scalar_lea.vmem [#allocation2], %s904
        // Predicated region
        $region41: #{tpu_custom_call.1} parent=39 // pred_check
          %p906 = pneg %p149
        $region42: #{tpu_custom_call.1} parent=39 // pred_check_branch
          %908 = sbr.rel (%p906) target = $region44
        $region43: #{tpu_custom_call.1} parent=39 // pred_region
          _
        $region44: #{tpu_custom_call.1} parent=39 // pred_fallthru
          _
        // Predicated region
        $region45: #{tpu_custom_call.1} parent=39 // pred_check
          %p909 = pneg %p175
        $region46: #{tpu_custom_call.1} parent=39 // pred_check_branch
          %911 = sbr.rel (%p909) target = $region48
        $region47: #{tpu_custom_call.1} parent=39 // pred_region
          %s913 = ssub.s32 16, 16
          %914 = vsyncadd %s903, %s913
          %s915 = smul.addr %s21, 16
          %s916 = scalar_lea.hbm %s6, %s915
          %s918 = sshll.u32 %s905, 4
          %s919 = int_to_ptr.vmem [resolvable:$true] %s918
          %921 = dma.vmem_to_hbm [thread:$0]  %s919, 16, %s916, %s903
        $region48: #{tpu_custom_call.1} parent=39 // pred_fallthru
          _
      $region40: #{tpu_custom_call.1} parent=5 // pred_fallthru
        _
      %p922 = scmp.le.s32.totalorder 2, %s16
      // Predicated region
      $region49: #{tpu_custom_call.1} parent=5 // pred_check
        %p923 = pneg %p922
      $region50: #{tpu_custom_call.1} parent=5 // pred_check_branch
        %925 = sbr.rel (%p923) target = $region52
      $region51: #{tpu_custom_call.1} parent=5 // pred_region
        %s926 = ssub.s32 %s16, 2
        // Predicated region
        $region53: #{tpu_custom_call.1} parent=51 // pred_check
          %p927 = pneg %p155
        $region54: #{tpu_custom_call.1} parent=51 // pred_check_branch
          %929 = sbr.rel (%p927) target = $region56
        $region55: #{tpu_custom_call.1} parent=51 // pred_region
          %p930 = scmp.lt.s32.totalorder %s22, 1
          %s931 = scalar_select %p930, %s22, 1
          %s932 = smul.addr %s931, 16
          %s933 = smul.addr %s932, 4
          %s934 = scalar_lea.vmem %s5, %s933
        $region56: #{tpu_custom_call.1} parent=51 // pred_fallthru
          _
        // Predicated region
        $region57: #{tpu_custom_call.1} parent=51 // pred_check
          %p935 = pneg %p181
        $region58: #{tpu_custom_call.1} parent=51 // pred_check_branch
          %937 = sbr.rel (%p935) target = $region60
        $region59: #{tpu_custom_call.1} parent=51 // pred_region
          %s938 = sand.u32 %s166, 1
          %s939 = scalar_lea.sflag [#allocation3], %s938
          %s940 = sand.u32 %s166, 1
          %s941 = scalar_lea.vmem [#allocation2], %s940
          %942 = dma.done %s939, 16
        $region60: #{tpu_custom_call.1} parent=51 // pred_fallthru
          _
      $region52: #{tpu_custom_call.1} parent=5 // pred_fallthru
        _
    $region6: #{tpu_custom_call.1} parent=1 // loop_footer
      %s20 = sadd.s32 1, %s16
    $region7: #{tpu_custom_call.1} parent=1 // loop_footer_branch
      %15 = sbr.rel target = $region3
    $region8: #{tpu_custom_call.1} parent=1 // loop_exit
      _
    %943 = vsyncpa [#allocation3], 1
    %s944 = scalar_lea.sflag [#allocation3], 1
    %945 = vsyncpa %s944, 1

</llo_original>
